<compile_context>
chip_gen: v5e
topology: v5e:2x2
jax: 0.10.0
libtpu: 0.0.40
codegen_flags: <defaults>
</compile_context>

<pallas_src>
import math
import jax
import jax.numpy as jnp
from jax.experimental import pallas as pl
from jax.experimental.pallas import tpu as pltpu


# ----------------------------------------------------------------------------
# Small helpers
# ----------------------------------------------------------------------------
def _round_up(x, m):
    return ((x + m - 1) // m) * m


def _pad_to(x, shape):
    pads = [(0, s - d) for d, s in zip(x.shape, shape)]
    if any(p[1] for p in pads):
        return jnp.pad(x, pads)
    return x


def _largest_divisor_leq(n, cap):
    cap = max(1, min(cap, n))
    for d in range(cap, 0, -1):
        if n % d == 0:
            return d
    return 1


def _pick_tile(total, unit, cap):
    """Largest multiple of `unit` that divides `total` and is <= cap."""
    assert total % unit == 0, (total, unit)
    return unit * _largest_divisor_leq(total // unit, max(1, cap // unit))


_VMEM_LIMIT_CACHE = None


def _vmem_limit_bytes():
    """Generation-aware VMEM budget (headroom left for compiler scratch)."""
    global _VMEM_LIMIT_CACHE
    if _VMEM_LIMIT_CACHE is None:
        try:
            phys = int(pltpu.get_tpu_info().vmem_capacity_bytes)
        except Exception:
            phys = 64 * 1024 * 1024  # be conservative (v7x-sized)
        # ~100 MiB on v5e/v6e (128 MiB physical), ~48 MiB on v7x (64 MiB).
        _VMEM_LIMIT_CACHE = (100 if phys >= (128 << 20) else 48) * 1024 * 1024
    return _VMEM_LIMIT_CACHE


_SINGLE_BUFFER_OK = None


def _single_buffer_ok():
    """Probe (once) whether pipeline_mode=pl.Buffered(1) compiles here."""
    global _SINGLE_BUFFER_OK
    if _SINGLE_BUFFER_OK is None:
        ok = False
        if hasattr(pl, "Buffered"):
            def _probe(x_ref, o_ref):
                o_ref[...] = x_ref[...] + 1.0
            try:
                x = jnp.zeros((8, 128), jnp.float32)
                out = pl.pallas_call(
                    _probe,
                    out_shape=jax.ShapeDtypeStruct((8, 128), jnp.float32),
                    grid=(1,),
                    in_specs=[pl.BlockSpec((8, 128), lambda i: (0, 0),
                                           pipeline_mode=pl.Buffered(1))],
                    out_specs=pl.BlockSpec((8, 128), lambda i: (0, 0)),
                )(x)
                ok = bool(jnp.all(out == 1.0))
            except Exception:
                ok = False
        _SINGLE_BUFFER_OK = ok
    return _SINGLE_BUFFER_OK


# ----------------------------------------------------------------------------
# Pallas kernel: tiled matmul + bias (hoisted X@W_ih projection and FC head).
# No scratch: the (i, j) output block is resident across the k axis, so the
# bias is folded into the k==0 write and partial sums accumulate in-place.
# ----------------------------------------------------------------------------
def _make_matmul_bias_kernel():
    def kernel(x_ref, w_ref, b_ref, o_ref):
        k = pl.program_id(2)
        # TODO(synk): for a bit-tight f32 verification at large K, request
        # precision=jax.lax.Precision.HIGHEST here if the Mosaic build lowers
        # dot_general precision; default precision suffices for these shapes.
        prod = jnp.dot(x_ref[...], w_ref[...],
                       preferred_element_type=jnp.float32)

        @pl.when(k == 0)
        def _():
            o_ref[...] = (prod + b_ref[...]).astype(o_ref.dtype)

        @pl.when(k > 0)
        def _():
            o_ref[...] = (o_ref[...].astype(jnp.float32) + prod).astype(o_ref.dtype)

    return kernel


def matmul_bias(x, w, b, *, out_dtype, vmem_limit=None,
                tm_cap=1024, tn_cap=512, tk_cap=2048):
    """x: (M, K); w: (K, N); b: (N,) -> (M, N) in out_dtype.

    Dims must already be lane/sublane-dense (M % 8 == 0, K % 128 == 0,
    N % 128 == 0); tiles are chosen to divide them exactly so there is no
    internal padding and no post-kernel slice copy.
    """
    M, K = x.shape
    K2, N = w.shape
    assert K == K2
    assert M % 8 == 0 and K % 128 == 0 and N % 128 == 0, (M, K, N)
    assert x.dtype == w.dtype, (x.dtype, w.dtype)
    tm = _pick_tile(M, 8, tm_cap)
    tn = _pick_tile(N, 128, tn_cap)
    tk = _pick_tile(K, 128, tk_cap)
    if jnp.dtype(out_dtype) != jnp.dtype(jnp.float32):
        # Narrow outputs accumulate straight into o_ref: keep a single K step
        # so the whole reduction stays inside the f32 MXU accumulator.
        tk = K
    bias = b.reshape(1, N).astype(jnp.float32)

    return pl.pallas_call(
        _make_matmul_bias_kernel(),
        out_shape=jax.ShapeDtypeStruct((M, N), out_dtype),
        grid_spec=pltpu.PrefetchScalarGridSpec(
            num_scalar_prefetch=0,
            grid=(M // tm, N // tn, K // tk),
            in_specs=[
                pl.BlockSpec((tm, tk), lambda i, j, k: (i, k)),
                pl.BlockSpec((tk, tn), lambda i, j, k: (k, j)),
                pl.BlockSpec((1, tn), lambda i, j, k: (0, j)),
            ],
            out_specs=pl.BlockSpec((tm, tn), lambda i, j, k: (i, j)),
        ),
        compiler_params=pltpu.CompilerParams(
            dimension_semantics=("parallel", "parallel", "arbitrary"),
            vmem_limit_bytes=vmem_limit or _vmem_limit_bytes()),
    )(x, w, bias)


# ----------------------------------------------------------------------------
# Pallas kernel: LSTM recurrence with precomputed input gates.
# grid=(batch_blocks, time_blocks); inner loop over Tt timesteps; h/c live in
# VMEM scratch across the (inner, "arbitrary") time axis.
# ----------------------------------------------------------------------------
def _make_lstm_recur_kernel(Tt, seq_len, compute_dtype):
    def kernel(gx_ref, whh_ref, h0_ref, c0_ref,
               y_ref, hN_ref, cN_ref, h_scr, c_scr):
        tb = pl.program_id(1)  # time-block index (inner grid axis)

        @pl.when(tb == 0)
        def _():
            # h0/c0 are zero-padded in all pad rows/lanes -- required for the
            # pad-lanes-stay-zero invariant of the recurrence.
            h_scr[...] = h0_ref[...]
            c_scr[...] = c0_ref[...]

        Hp = h_scr.shape[-1]

        def step(t, carry):
            h = h_scr[...]
            c = c_scr[...]
            # whh is stored in the MXU compute dtype: the ref load feeds the
            # matmul directly (no materialized astype copy of the weights).
            gates = gx_ref[t] + jnp.dot(
                h.astype(compute_dtype), whh_ref[...],
                preferred_element_type=jnp.float32)
            # Lane-aligned gate slices (Hp is a multiple of 128).
            i_g = jax.nn.sigmoid(gates[:, 0 * Hp:1 * Hp])
            f_g = jax.nn.sigmoid(gates[:, 1 * Hp:2 * Hp])
            g_g = jnp.tanh(gates[:, 2 * Hp:3 * Hp])
            o_g = jax.nn.sigmoid(gates[:, 3 * Hp:4 * Hp])
            c_new = f_g * c + i_g * g_g
            h_new = o_g * jnp.tanh(c_new)
            h_scr[...] = h_new
            c_scr[...] = c_new
            y_ref[t] = h_new.astype(y_ref.dtype)

            # The time axis may be zero-padded past seq_len: capture the true
            # final state at the last *valid* timestep.
            @pl.when(tb * Tt + t == seq_len - 1)
            def _():
                hN_ref[...] = h_new
                cN_ref[...] = c_new

            return carry

        # Moderate unroll: the h->h dependence is serial, so a deep unroll
        # only risks vreg spills at large Hp.
        jax.lax.fori_loop(0, Tt, step, 0, unroll=4)

    return kernel


def lstm_recurrence(gates_x, whh, h0, c0, *, seq_len, compute_dtype,
                    time_block=16, vmem_limit=None):
    """gates_x: (Tp, Bp, 4*Hp) compute dtype (bias folded in; Tp padded to a
    multiple of time_block); whh: (Hp, 4*Hp) compute dtype; h0/c0: (Bp, Hp)
    f32 zero-padded.  Returns y (Tp, Bp, Hp) compute dtype and hN, cN f32.
    """
    Tp, Bp, G = gates_x.shape
    Hp = h0.shape[-1]
    assert G == 4 * Hp and Tp % time_block == 0
    Tt = time_block
    n_tb = Tp // Tt
    # Split the batch into two blocks when possible so v7x can run the
    # recurrence on both TensorCores (no-op on v5e/v6e and at tiny batch).
    n_bb = 2 if (Bp % 16 == 0) else 1
    Bblk = Bp // n_bb

    # Constant / rarely-revisited blocks: single-buffer them to halve their
    # VMEM footprint (whh dominates at large Hp; critical on v7x's 64 MiB).
    if _single_buffer_ok():
        def const_spec(shape, index_map):
            return pl.BlockSpec(shape, index_map, pipeline_mode=pl.Buffered(1))
    else:
        def const_spec(shape, index_map):
            return pl.BlockSpec(shape, index_map)

    # TODO(synk): for Hp >= 2048 on v7x, tile whh along the 4*Hp gate axis
    # (per-gate-panel inner loop) so the resident weight fits 64 MiB.
    # TODO(synk): for Hp <= 256, pltpu.matmul_push_rhs/matmul_acc_lhs could
    # hold whh stationary in the MXU across timesteps.
    return pl.pallas_call(
        _make_lstm_recur_kernel(Tt, seq_len, compute_dtype),
        out_shape=(jax.ShapeDtypeStruct((Tp, Bp, Hp), compute_dtype),
                   jax.ShapeDtypeStruct((Bp, Hp), jnp.float32),
                   jax.ShapeDtypeStruct((Bp, Hp), jnp.float32)),
        grid_spec=pltpu.PrefetchScalarGridSpec(
            num_scalar_prefetch=0,
            grid=(n_bb, n_tb),
            in_specs=[
                pl.BlockSpec((Tt, Bblk, G), lambda bb, tb: (tb, bb, 0)),
                const_spec((Hp, G), lambda bb, tb: (0, 0)),
                const_spec((Bblk, Hp), lambda bb, tb: (bb, 0)),
                const_spec((Bblk, Hp), lambda bb, tb: (bb, 0)),
            ],
            out_specs=(
                pl.BlockSpec((Tt, Bblk, Hp), lambda bb, tb: (tb, bb, 0)),
                pl.BlockSpec((Bblk, Hp), lambda bb, tb: (bb, 0)),
                pl.BlockSpec((Bblk, Hp), lambda bb, tb: (bb, 0)),
            ),
            scratch_shapes=[pltpu.VMEM((Bblk, Hp), jnp.float32),
                            pltpu.VMEM((Bblk, Hp), jnp.float32)],
        ),
        compiler_params=pltpu.CompilerParams(
            dimension_semantics=("parallel", "arbitrary"),
            vmem_limit_bytes=vmem_limit or _vmem_limit_bytes()),
    )(gates_x, whh, h0, c0)


# ----------------------------------------------------------------------------
# Parameters: raw (PyTorch-equivalent, f32, unpadded) + kernel-ready (padded)
# ----------------------------------------------------------------------------
def init_params(key, vocab_size, embedding_dim, hidden_dim, num_layers):
    init_range_emb = 0.1
    init_range_other = 1.0 / math.sqrt(hidden_dim)

    keys = jax.random.split(key, 2 + 4 * num_layers)
    params = {}
    params["embedding"] = jax.random.uniform(
        keys[0], (vocab_size, embedding_dim), jnp.float32,
        -init_range_emb, init_range_emb)
    # fc weight stored transposed: (H, V)
    params["fc_w"] = jax.random.uniform(
        keys[1], (hidden_dim, vocab_size), jnp.float32,
        -init_range_other, init_range_other)
    params["fc_b"] = jnp.zeros((vocab_size,), jnp.float32)

    params["lstm"] = []
    for layer in range(num_layers):
        in_dim = embedding_dim if layer == 0 else hidden_dim
        k = keys[2 + 4 * layer: 2 + 4 * (layer + 1)]
        wih = jax.random.uniform(k[0], (in_dim, 4 * hidden_dim), jnp.float32,
                                 -init_range_other, init_range_other)
        whh = jax.random.uniform(k[1], (hidden_dim, 4 * hidden_dim), jnp.float32,
                                 -init_range_other, init_range_other)
        b_ih = jax.random.uniform(k[2], (4 * hidden_dim,), jnp.float32,
                                  -init_range_other, init_range_other)
        b_hh = jax.random.uniform(k[3], (4 * hidden_dim,), jnp.float32,
                                  -init_range_other, init_range_other)
        params["lstm"].append(dict(wih=wih, whh=whh, b=b_ih + b_hh))
    return params


def _pad_gate_weight(w, in_dim_p, Hp):
    """(in_dim, 4H) -> (in_dim_p, 4*Hp), each gate placed in its own Hp slot."""
    in_dim, four_h = w.shape
    H = four_h // 4
    w4 = w.reshape(in_dim, 4, H)
    w4 = _pad_to(w4, (in_dim_p, 4, Hp))
    return w4.reshape(in_dim_p, 4 * Hp)


def _pad_gate_bias(b, Hp):
    H = b.shape[0] // 4
    b4 = _pad_to(b.reshape(4, H), (4, Hp))
    return b4.reshape(4 * Hp)


def prepare_params(raw, compute_dtype=jnp.bfloat16):
    """Pad to lane-dense shapes (multiples of 128) and cast to compute dtype.

    The embedding table is also stored in compute dtype so inter-kernel
    activations stay narrow (halves HBM traffic on the projections).
    """
    V, E = raw["embedding"].shape
    H = raw["fc_w"].shape[0]
    Ep, Hp, Vp = _round_up(E, 128), _round_up(H, 128), _round_up(V, 128)

    kp = {"dims": dict(V=V, E=E, H=H, Ep=Ep, Hp=Hp, Vp=Vp),
          "compute_dtype": compute_dtype}
    kp["embedding"] = _pad_to(raw["embedding"], (V, Ep)).astype(compute_dtype)
    kp["fc_w"] = _pad_to(raw["fc_w"], (Hp, Vp)).astype(compute_dtype)
    kp["fc_b"] = _pad_to(raw["fc_b"], (Vp,))
    kp["lstm"] = []
    for p in raw["lstm"]:
        in_dim = p["wih"].shape[0]
        in_dim_p = _round_up(in_dim, 128)
        kp["lstm"].append(dict(
            wih=_pad_gate_weight(p["wih"], in_dim_p, Hp).astype(compute_dtype),
            whh=_pad_gate_weight(p["whh"], Hp, Hp).astype(compute_dtype),
            b=_pad_gate_bias(p["b"], Hp)))
    return kp


# ----------------------------------------------------------------------------
# Forward pass
# ----------------------------------------------------------------------------
def forward(kparams, src, hidden, *, time_block=16):
    """src: (T, B) int32 tokens; hidden: (h, c) each (num_layers, B, H)."""
    dims = kparams["dims"]
    V, H = dims["V"], dims["H"]
    Hp, Vp = dims["Hp"], dims["Vp"]
    compute_dtype = kparams["compute_dtype"]

    h0_all, c0_all = hidden
    L, B, _ = h0_all.shape
    T = src.shape[0]
    Bp = _round_up(B, 8)
    Tp = _round_up(T, time_block)
    vmem_limit = _vmem_limit_bytes()

    # Embedding lookup (plain JAX gather).  Dropout layers = identity (eval).
    x = jnp.take(kparams["embedding"], src, axis=0)  # (T, B, Ep), compute dtype
    # Zero-pad time (full time blocks) and batch (sublane multiple).  Padded
    # rows/lanes provably stay zero through the recurrence: zero weights/bias
    # for pad lanes and zero-padded h0/c0 keep c_pad, h_pad at 0.
    x = _pad_to(x, (Tp, Bp, x.shape[-1]))
    h0p = _pad_to(h0_all, (L, Bp, Hp))
    c0p = _pad_to(c0_all, (L, Bp, Hp))

    # TODO(synk): optionally fuse the input projection into the recurrence
    # kernel per time block to avoid the gates_x HBM round-trip entirely.
    hN_list, cN_list = [], []
    for layer, p in enumerate(kparams["lstm"]):
        in_dim_p = x.shape[-1]
        # Hoisted input projection: one tiled MXU matmul over all Tp*Bp rows
        # with the fused (b_ih + b_hh) bias.  Output stays in the padded slab
        # (tiles divide the shapes exactly -> no slice copy) and is emitted
        # in the compute dtype (bf16 on the fast path).
        gx = matmul_bias(x.reshape(Tp * Bp, in_dim_p), p["wih"], p["b"],
                         out_dtype=compute_dtype, vmem_limit=vmem_limit)
        gx = gx.reshape(Tp, Bp, 4 * Hp)
        x, hN, cN = lstm_recurrence(gx, p["whh"], h0p[layer], c0p[layer],
                                    seq_len=T, compute_dtype=compute_dtype,
                                    time_block=time_block,
                                    vmem_limit=vmem_limit)
        hN_list.append(hN)
        cN_list.append(cN)
        # TODO(synk): nn.LSTM applies inter-layer dropout in training mode;
        # identity here (eval semantics).

    # Final FC projection over the whole padded slab; the only slice is the
    # unavoidable final logits slice.
    pred = matmul_bias(x.reshape(Tp * Bp, Hp), kparams["fc_w"], kparams["fc_b"],
                       out_dtype=jnp.float32, vmem_limit=vmem_limit)
    pred = pred.reshape(Tp, Bp, Vp)[:T, :B, :V]

    hN = jnp.stack(hN_list)[:, :B, :H]
    cN = jnp.stack(cN_list)[:, :B, :H]
    return pred, (hN, cN)


# ----------------------------------------------------------------------------
# Pure-JAX reference (for correctness check; uses raw f32 unpadded params)
# ----------------------------------------------------------------------------
def forward_ref(raw, src, hidden):
    h0_all, c0_all = hidden
    x = jnp.take(raw["embedding"], src, axis=0)

    def cell_step(carry, x_t, wih, whh, b):
        h, c = carry
        gates = x_t @ wih + h @ whh + b
        H = h.shape[-1]
        i_g = jax.nn.sigmoid(gates[:, 0 * H:1 * H])
        f_g = jax.nn.sigmoid(gates[:, 1 * H:2 * H])
        g_g = jnp.tanh(gates[:, 2 * H:3 * H])
        o_g = jax.nn.sigmoid(gates[:, 3 * H:4 * H])
        c_new = f_g * c + i_g * g_g
        h_new = o_g * jnp.tanh(c_new)
        return (h_new, c_new), h_new

    hN_list, cN_list = [], []
    for layer, p in enumerate(raw["lstm"]):
        (hN, cN), ys = jax.lax.scan(
            lambda carry, xt: cell_step(carry, xt, p["wih"], p["whh"], p["b"]),
            (h0_all[layer], c0_all[layer]), x)
        x = ys
        hN_list.append(hN)
        cN_list.append(cN)

    pred = x @ raw["fc_w"] + raw["fc_b"]
    return pred, (jnp.stack(hN_list), jnp.stack(cN_list))


if __name__ == "__main__":
    # Small shapes consistent with the module's forward.
    vocab_size = 50
    embedding_dim = 32
    hidden_dim = 32
    num_layers = 2
    seq_len = 8
    batch = 2

    key = jax.random.PRNGKey(0)
    pkey, dkey = jax.random.split(key)
    raw = init_params(pkey, vocab_size, embedding_dim, hidden_dim, num_layers)

    src = jax.random.randint(dkey, (seq_len, batch), 0, vocab_size, jnp.int32)
    hidden = (jnp.zeros((num_layers, batch, hidden_dim), jnp.float32),
              jnp.zeros((num_layers, batch, hidden_dim), jnp.float32))

    pred_ref, (hN_ref, cN_ref) = forward_ref(raw, src, hidden)

    # --- f32 path: tight correctness check against the pure-JAX reference ---
    kp32 = prepare_params(raw, jnp.float32)
    pred, (hN, cN) = forward(kp32, src, hidden)
    jax.block_until_ready(pred)
    jax.block_until_ready(hN)
    jax.block_until_ready(cN)
    assert pred.shape == (seq_len, batch, vocab_size)
    assert hN.shape == (num_layers, batch, hidden_dim)
    assert jnp.allclose(pred, pred_ref, atol=1e-4, rtol=1e-4)
    assert jnp.allclose(hN, hN_ref, atol=1e-4, rtol=1e-4)
    assert jnp.allclose(cN, cN_ref, atol=1e-4, rtol=1e-4)

    # --- bf16 path: bf16 weights AND inter-kernel activations, f32 accum ----
    kp16 = prepare_params(raw, jnp.bfloat16)
    pred16, (hN16, cN16) = forward(kp16, src, hidden)
    jax.block_until_ready(pred16)
    assert pred16.shape == (seq_len, batch, vocab_size)
    assert jnp.allclose(pred16, pred_ref, atol=5e-2, rtol=5e-2)

    print("KERNEL_OK")
</pallas_src>

<mosaic_0001>
module attributes {stable_mosaic.version = 11 : i64} {
  func.func @kernel(%arg0: i32, %arg1: i32, %arg2: i32, %arg3: memref<128x128xf32, #tpu.memory_space<vmem>>, %arg4: memref<128x512xf32, #tpu.memory_space<vmem>>, %arg5: memref<1x512xf32, #tpu.memory_space<vmem>>, %arg6: memref<128x512xf32, #tpu.memory_space<vmem>>) attributes {dimension_semantics = [#tpu.dimension_semantics<parallel>, #tpu.dimension_semantics<parallel>, #tpu.dimension_semantics<arbitrary>], iteration_bounds = array<i64: 1, 1, 1>, scalar_prefetch = 0 : i64, scratch_operands = 0 : i64, tpu.core_type = #tpu.core_type<tc>, window_params = [{transform_indices = @transform_0, window_bounds = array<i64: 128, 128>}, {transform_indices = @transform_1, window_bounds = array<i64: 128, 512>}, {transform_indices = @transform_2, window_bounds = array<i64: 1, 512>}, {transform_indices = @transform_3, window_bounds = array<i64: 128, 512>}]} {
    %c0 = arith.constant 0 : index
    %c0_0 = arith.constant 0 : index
    %0 = vector.load %arg3[%c0, %c0_0] : memref<128x128xf32, #tpu.memory_space<vmem>>, vector<128x128xf32>
    %c0_1 = arith.constant 0 : index
    %c0_2 = arith.constant 0 : index
    %1 = vector.load %arg4[%c0_1, %c0_2] : memref<128x512xf32, #tpu.memory_space<vmem>>, vector<128x512xf32>
    %cst = arith.constant dense<0.000000e+00> : vector<128x512xf32>
    %2 = tpu.matmul %0, %1, %cst {dimension_numbers = #tpu.dot_dimension_numbers<[1], [0], [0], [1], [0, 0, 1, 1], [], []>} : vector<128x128xf32>, vector<128x512xf32>, vector<128x512xf32> -> vector<128x512xf32>
    %c0_i32 = arith.constant 0 : i32
    %3 = arith.cmpi eq, %arg2, %c0_i32 : i32
    %4 = arith.extui %3 : i1 to i32
    %c0_i32_3 = arith.constant 0 : i32
    %5 = arith.cmpi ne, %4, %c0_i32_3 : i32
    scf.if %5 {
      %c0_6 = arith.constant 0 : index
      %c0_7 = arith.constant 0 : index
      %9 = vector.load %arg5[%c0_6, %c0_7] : memref<1x512xf32, #tpu.memory_space<vmem>>, vector<1x512xf32>
      %10 = vector.broadcast %9 : vector<1x512xf32> to vector<128x512xf32>
      %11 = arith.addf %2, %10 : vector<128x512xf32>
      %c0_8 = arith.constant 0 : index
      %c0_9 = arith.constant 0 : index
      %12 = vector.load %arg6[%c0_8, %c0_9] : memref<128x512xf32, #tpu.memory_space<vmem>>, vector<128x512xf32>
      tpu.vector_store %arg6[%c0_8, %c0_9], %11 {strides = array<i32>} : memref<128x512xf32, #tpu.memory_space<vmem>>, vector<128x512xf32>,
    } else {
    }
    %c0_i32_4 = arith.constant 0 : i32
    %6 = arith.cmpi sgt, %arg2, %c0_i32_4 : i32
    %7 = arith.extui %6 : i1 to i32
    %c0_i32_5 = arith.constant 0 : i32
    %8 = arith.cmpi ne, %7, %c0_i32_5 : i32
    scf.if %8 {
      %c0_6 = arith.constant 0 : index
      %c0_7 = arith.constant 0 : index
      %9 = vector.load %arg6[%c0_6, %c0_7] : memref<128x512xf32, #tpu.memory_space<vmem>>, vector<128x512xf32>
      %10 = arith.addf %9, %2 : vector<128x512xf32>
      %c0_8 = arith.constant 0 : index
      %c0_9 = arith.constant 0 : index
      %11 = vector.load %arg6[%c0_8, %c0_9] : memref<128x512xf32, #tpu.memory_space<vmem>>, vector<128x512xf32>
      tpu.vector_store %arg6[%c0_8, %c0_9], %10 {strides = array<i32>} : memref<128x512xf32, #tpu.memory_space<vmem>>, vector<128x512xf32>,
    } else {
    }
    return
  }
  func.func @transform_0(%arg0: i32, %arg1: i32, %arg2: i32) -> (i32, i32) {
    %c0_i32 = arith.constant 0 : i32
    return %arg0, %arg2 : i32, i32
  }
  func.func @transform_1(%arg0: i32, %arg1: i32, %arg2: i32) -> (i32, i32) {
    %c0_i32 = arith.constant 0 : i32
    return %arg2, %arg1 : i32, i32
  }
  func.func @transform_2(%arg0: i32, %arg1: i32, %arg2: i32) -> (i32, i32) {
    %c0_i32 = arith.constant 0 : i32
    %c0_i32_0 = arith.constant 0 : i32
    return %c0_i32, %arg1 : i32, i32
  }
  func.func @transform_3(%arg0: i32, %arg1: i32, %arg2: i32) -> (i32, i32) {
    %c0_i32 = arith.constant 0 : i32
    return %arg0, %arg1 : i32, i32
  }
}

</mosaic_0001>

<llo_original>
// kernel: tpu_custom_call.1
$region0: #{tpu_custom_call.1}
  #allocation0 [shape = 'u32[]', space=smem, size = 0x4, offset = 0x4, fixed_abs, tag = 'smem constant byte address 0x4 - core index']
  #allocation1 [shape = 'u32[72,128]{1,0:T(1,128)}', space=vmem, size = 0x9000, scoped, tag = 'internal scratch']
  %s0 = inlined_call_operand.hbm [shape: f32[128,128], index: 0, kind: input, shape index: {}]
  %s1 = inlined_call_operand.hbm [shape: f32[128,512], index: 1, kind: input, shape index: {}]
  %s2 = inlined_call_operand.hbm [shape: f32[1,512], index: 2, kind: input, shape index: {}]
  %s3 = inlined_call_operand.hbm [shape: f32[128,512], index: 3, kind: output, shape index: {}]
  %s4 = sld [smem:[#allocation0]]
  $region42: #{tpu_custom_call.1} parent=0
    _
  %s6 = ssub.s32 1, %s4
  %s7 = scalar_select 0, %s6, %s4
  $region1: #{tpu_custom_call.1} parent=0
    #allocation2 [shape = 'u8[65536]{0}', space=vmem, size = 0x10000, scoped, tag = 'input window, operand 0, single buffered']
    #allocation3 [shape = 's32[1]{0}', space=sflag, size = 0x4, scoped, tag = 'scoped memory for tpu_custom_call.1']
    #allocation4 [shape = 's32[1]{0}', space=sflag, size = 0x4, scoped, tag = 'scoped memory for tpu_custom_call.1']
    #allocation5 [shape = 'u8[262144]{0}', space=vmem, size = 0x40000, scoped, tag = 'input window, operand 1, single buffered']
    #allocation6 [shape = 's32[1]{0}', space=sflag, size = 0x4, scoped, tag = 'scoped memory for tpu_custom_call.1']
    #allocation7 [shape = 'u8[2048]{0}', space=vmem, size = 0x800, scoped, tag = 'input window, operand 2, single buffered']
    #allocation8 [shape = 'u8[262144]{0}', space=vmem, size = 0x40000, scoped, tag = 'output window, operand 0, single buffered']
    %8 = vsyncpa [#allocation3], 0
    %9 = vsyncpa [#allocation6], 0
    %10 = vsyncpa [#allocation4], 0
    // Predicated region
    $region2: #{tpu_custom_call.1} parent=1 // pred_check
      _
    $region3: #{tpu_custom_call.1} parent=1 // pred_check_branch
      %12 = sbr.rel (0) target = $region5
    $region4: #{tpu_custom_call.1} parent=1 // pred_region
      %14 = vsyncadd [#allocation3], 0
      %s15 = sshll.u32 %s0, 4
      %s16 = int_to_ptr.hbm [resolvable:$true] %s15
      %s17 = sshll.u32 [#allocation2], 4
      %s18 = int_to_ptr.vmem [resolvable:$true] %s17
      %23 = dma.hbm_to_vmem [thread:$0]  %s16, 2048, %s18, [#allocation3], 128, 128, 8
    $region5: #{tpu_custom_call.1} parent=1 // pred_fallthru
      _
    // Predicated region
    $region6: #{tpu_custom_call.1} parent=1 // pred_check
      _
    $region7: #{tpu_custom_call.1} parent=1 // pred_check_branch
      %25 = sbr.rel (0) target = $region9
    $region8: #{tpu_custom_call.1} parent=1 // pred_region
      %27 = vsyncadd [#allocation6], 0
      %s28 = sshll.u32 %s1, 4
      %s29 = int_to_ptr.hbm [resolvable:$true] %s28
      %s30 = sshll.u32 [#allocation5], 4
      %s31 = int_to_ptr.vmem [resolvable:$true] %s30
      %36 = dma.hbm_to_vmem [thread:$0]  %s29, 8192, %s31, [#allocation6], 512, 512, 32
    $region9: #{tpu_custom_call.1} parent=1 // pred_fallthru
      _
    // Predicated region
    $region10: #{tpu_custom_call.1} parent=1 // pred_check
      _
    $region11: #{tpu_custom_call.1} parent=1 // pred_check_branch
      %38 = sbr.rel (0) target = $region13
    $region12: #{tpu_custom_call.1} parent=1 // pred_region
      %40 = vsyncadd [#allocation6], 0
      %s42 = sshll.u32 %s2, 4
      %s43 = int_to_ptr.hbm [resolvable:$true] %s42
      %s44 = sshll.u32 [#allocation7], 4
      %s45 = int_to_ptr.vmem [resolvable:$true] %s44
      %47 = dma.hbm_to_vmem [thread:$0]  %s43, 64, %s45, [#allocation6]
    $region13: #{tpu_custom_call.1} parent=1 // pred_fallthru
      _
    // Predicated region
    $region14: #{tpu_custom_call.1} parent=1 // pred_check
      _
    $region15: #{tpu_custom_call.1} parent=1 // pred_check_branch
      %49 = sbr.rel (0) target = $region17
    $region16: #{tpu_custom_call.1} parent=1 // pred_region
      %51 = dma.done [#allocation3], 2048
    $region17: #{tpu_custom_call.1} parent=1 // pred_fallthru
      _
    // Predicated region
    $region18: #{tpu_custom_call.1} parent=1 // pred_check
      _
    $region19: #{tpu_custom_call.1} parent=1 // pred_check_branch
      %53 = sbr.rel (0) target = $region21
    $region20: #{tpu_custom_call.1} parent=1 // pred_region
      %55 = dma.done [#allocation6], 8192
    $region21: #{tpu_custom_call.1} parent=1 // pred_fallthru
      _
    // Predicated region
    $region22: #{tpu_custom_call.1} parent=1 // pred_check
      _
    $region23: #{tpu_custom_call.1} parent=1 // pred_check_branch
      %57 = sbr.rel (0) target = $region25
    $region24: #{tpu_custom_call.1} parent=1 // pred_region
      %59 = dma.done [#allocation6], 64
    $region25: #{tpu_custom_call.1} parent=1 // pred_fallthru
      _
    %v60 = vld [vmem:[#allocation2] sm:$0xff]
    %v61 = vld [vmem:[#allocation2 + $0x8] sm:$0xff]
    %v62 = vld [vmem:[#allocation2 + $0x10] sm:$0xff]
    %v63 = vld [vmem:[#allocation2 + $0x18] sm:$0xff]
    %v64 = vld [vmem:[#allocation2 + $0x20] sm:$0xff]
    %v65 = vld [vmem:[#allocation2 + $0x28] sm:$0xff]
    %v66 = vld [vmem:[#allocation2 + $0x30] sm:$0xff]
    %v67 = vld [vmem:[#allocation2 + $0x38] sm:$0xff]
    %v68 = vld [vmem:[#allocation2 + $0x40] sm:$0xff]
    %v69 = vld [vmem:[#allocation2 + $0x48] sm:$0xff]
    %v70 = vld [vmem:[#allocation2 + $0x50] sm:$0xff]
    %v71 = vld [vmem:[#allocation2 + $0x58] sm:$0xff]
    %v72 = vld [vmem:[#allocation2 + $0x60] sm:$0xff]
    %v73 = vld [vmem:[#allocation2 + $0x68] sm:$0xff]
    %v74 = vld [vmem:[#allocation2 + $0x70] sm:$0xff]
    %v75 = vld [vmem:[#allocation2 + $0x78] sm:$0xff]
    %v76 = vld [vmem:[#allocation5] sm:$0xff]
    %v77 = vld [vmem:[#allocation5 + $0x8] sm:$0xff]
    %v78 = vld [vmem:[#allocation5 + $0x10] sm:$0xff]
    %v79 = vld [vmem:[#allocation5 + $0x18] sm:$0xff]
    %v80 = vld [vmem:[#allocation5 + $0x20] sm:$0xff]
    %v81 = vld [vmem:[#allocation5 + $0x28] sm:$0xff]
    %v82 = vld [vmem:[#allocation5 + $0x30] sm:$0xff]
    %v83 = vld [vmem:[#allocation5 + $0x38] sm:$0xff]
    %v84 = vld [vmem:[#allocation5 + $0x40] sm:$0xff]
    %v85 = vld [vmem:[#allocation5 + $0x48] sm:$0xff]
    %v86 = vld [vmem:[#allocation5 + $0x50] sm:$0xff]
    %v87 = vld [vmem:[#allocation5 + $0x58] sm:$0xff]
    %v88 = vld [vmem:[#allocation5 + $0x60] sm:$0xff]
    %v89 = vld [vmem:[#allocation5 + $0x68] sm:$0xff]
    %v90 = vld [vmem:[#allocation5 + $0x70] sm:$0xff]
    %v91 = vld [vmem:[#allocation5 + $0x78] sm:$0xff]
    %v92 = vld [vmem:[#allocation5 + $0x80] sm:$0xff]
    %v93 = vld [vmem:[#allocation5 + $0x88] sm:$0xff]
    %v94 = vld [vmem:[#allocation5 + $0x90] sm:$0xff]
    %v95 = vld [vmem:[#allocation5 + $0x98] sm:$0xff]
    %v96 = vld [vmem:[#allocation5 + $0xa0] sm:$0xff]
    %v97 = vld [vmem:[#allocation5 + $0xa8] sm:$0xff]
    %v98 = vld [vmem:[#allocation5 + $0xb0] sm:$0xff]
    %v99 = vld [vmem:[#allocation5 + $0xb8] sm:$0xff]
    %v100 = vld [vmem:[#allocation5 + $0xc0] sm:$0xff]
    %v101 = vld [vmem:[#allocation5 + $0xc8] sm:$0xff]
    %v102 = vld [vmem:[#allocation5 + $0xd0] sm:$0xff]
    %v103 = vld [vmem:[#allocation5 + $0xd8] sm:$0xff]
    %v104 = vld [vmem:[#allocation5 + $0xe0] sm:$0xff]
    %v105 = vld [vmem:[#allocation5 + $0xe8] sm:$0xff]
    %v106 = vld [vmem:[#allocation5 + $0xf0] sm:$0xff]
    %v107 = vld [vmem:[#allocation5 + $0xf8] sm:$0xff]
    %v108 = vld [vmem:[#allocation5 + $0x100] sm:$0xff]
    %v109 = vld [vmem:[#allocation5 + $0x108] sm:$0xff]
    %v110 = vld [vmem:[#allocation5 + $0x110] sm:$0xff]
    %v111 = vld [vmem:[#allocation5 + $0x118] sm:$0xff]
    %v112 = vld [vmem:[#allocation5 + $0x120] sm:$0xff]
    %v113 = vld [vmem:[#allocation5 + $0x128] sm:$0xff]
    %v114 = vld [vmem:[#allocation5 + $0x130] sm:$0xff]
    %v115 = vld [vmem:[#allocation5 + $0x138] sm:$0xff]
    %v116 = vld [vmem:[#allocation5 + $0x140] sm:$0xff]
    %v117 = vld [vmem:[#allocation5 + $0x148] sm:$0xff]
    %v118 = vld [vmem:[#allocation5 + $0x150] sm:$0xff]
    %v119 = vld [vmem:[#allocation5 + $0x158] sm:$0xff]
    %v120 = vld [vmem:[#allocation5 + $0x160] sm:$0xff]
    %v121 = vld [vmem:[#allocation5 + $0x168] sm:$0xff]
    %v122 = vld [vmem:[#allocation5 + $0x170] sm:$0xff]
    %v123 = vld [vmem:[#allocation5 + $0x178] sm:$0xff]
    %v124 = vld [vmem:[#allocation5 + $0x180] sm:$0xff]
    %v125 = vld [vmem:[#allocation5 + $0x188] sm:$0xff]
    %v126 = vld [vmem:[#allocation5 + $0x190] sm:$0xff]
    %v127 = vld [vmem:[#allocation5 + $0x198] sm:$0xff]
    %v128 = vld [vmem:[#allocation5 + $0x1a0] sm:$0xff]
    %v129 = vld [vmem:[#allocation5 + $0x1a8] sm:$0xff]
    %v130 = vld [vmem:[#allocation5 + $0x1b0] sm:$0xff]
    %v131 = vld [vmem:[#allocation5 + $0x1b8] sm:$0xff]
    %v132 = vld [vmem:[#allocation5 + $0x1c0] sm:$0xff]
    %v133 = vld [vmem:[#allocation5 + $0x1c8] sm:$0xff]
    %v134 = vld [vmem:[#allocation5 + $0x1d0] sm:$0xff]
    %v135 = vld [vmem:[#allocation5 + $0x1d8] sm:$0xff]
    %v136 = vld [vmem:[#allocation5 + $0x1e0] sm:$0xff]
    %v137 = vld [vmem:[#allocation5 + $0x1e8] sm:$0xff]
    %v138 = vld [vmem:[#allocation5 + $0x1f0] sm:$0xff]
    %v139 = vld [vmem:[#allocation5 + $0x1f8] sm:$0xff]
    %140 = vmatpush.msra.mxu0 %v136
    %141 = vmatpush.msra.mxu0 %v132
    %142 = vmatpush.msra.mxu0 %v128
    %143 = vmatpush.msra.mxu0 %v124
    %144 = vmatpush.msra.mxu0 %v120
    %145 = vmatpush.msra.mxu0 %v116
    %146 = vmatpush.msra.mxu0 %v112
    %147 = vmatpush.msra.mxu0 %v108
    %148 = vmatpush.msra.mxu0 %v104
    %149 = vmatpush.msra.mxu0 %v100
    %150 = vmatpush.msra.mxu0 %v96
    %151 = vmatpush.msra.mxu0 %v92
    %152 = vmatpush.msra.mxu0 %v88
    %153 = vmatpush.msra.mxu0 %v84
    %154 = vmatpush.msra.mxu0 %v80
    %155 = vmatpush.msra.mxu0 %v76
    %156 = vmatmul.f32.gmra.mxu0 %v60
    %v157 = vpop.f32.mrf.mxu0
    %v158 = vadd.f32 0.0, %v157
    %159 = vmatmul.f32.gmra.mxu0 %v61
    %v160 = vpop.f32.mrf.mxu0
    %v161 = vadd.f32 0.0, %v160
    %162 = vmatmul.f32.gmra.mxu0 %v62
    %v163 = vpop.f32.mrf.mxu0
    %v164 = vadd.f32 0.0, %v163
    %165 = vmatmul.f32.gmra.mxu0 %v63
    %v166 = vpop.f32.mrf.mxu0
    %v167 = vadd.f32 0.0, %v166
    %168 = vmatmul.f32.gmra.mxu0 %v64
    %v169 = vpop.f32.mrf.mxu0
    %v170 = vadd.f32 0.0, %v169
    %171 = vmatmul.f32.gmra.mxu0 %v65
    %v172 = vpop.f32.mrf.mxu0
    %v173 = vadd.f32 0.0, %v172
    %174 = vmatmul.f32.gmra.mxu0 %v66
    %v175 = vpop.f32.mrf.mxu0
    %v176 = vadd.f32 0.0, %v175
    %177 = vmatmul.f32.gmra.mxu0 %v67
    %v178 = vpop.f32.mrf.mxu0
    %v179 = vadd.f32 0.0, %v178
    %180 = vmatmul.f32.gmra.mxu0 %v68
    %v181 = vpop.f32.mrf.mxu0
    %v182 = vadd.f32 0.0, %v181
    %183 = vmatmul.f32.gmra.mxu0 %v69
    %v184 = vpop.f32.mrf.mxu0
    %v185 = vadd.f32 0.0, %v184
    %186 = vmatmul.f32.gmra.mxu0 %v70
    %v187 = vpop.f32.mrf.mxu0
    %v188 = vadd.f32 0.0, %v187
    %189 = vmatmul.f32.gmra.mxu0 %v71
    %v190 = vpop.f32.mrf.mxu0
    %v191 = vadd.f32 0.0, %v190
    %192 = vmatmul.f32.gmra.mxu0 %v72
    %v193 = vpop.f32.mrf.mxu0
    %v194 = vadd.f32 0.0, %v193
    %195 = vmatmul.f32.gmra.mxu0 %v73
    %v196 = vpop.f32.mrf.mxu0
    %v197 = vadd.f32 0.0, %v196
    %198 = vmatmul.f32.gmra.mxu0 %v74
    %v199 = vpop.f32.mrf.mxu0
    %v200 = vadd.f32 0.0, %v199
    %201 = vmatmul.f32.gmra.mxu0 %v75
    %v202 = vpop.f32.mrf.mxu0
    %v203 = vadd.f32 0.0, %v202
    %204 = vdwg.mxu0
    %205 = vmatpush.msra.mxu0 %v137
    %206 = vmatpush.msra.mxu0 %v133
    %207 = vmatpush.msra.mxu0 %v129
    %208 = vmatpush.msra.mxu0 %v125
    %209 = vmatpush.msra.mxu0 %v121
    %210 = vmatpush.msra.mxu0 %v117
    %211 = vmatpush.msra.mxu0 %v113
    %212 = vmatpush.msra.mxu0 %v109
    %213 = vmatpush.msra.mxu0 %v105
    %214 = vmatpush.msra.mxu0 %v101
    %215 = vmatpush.msra.mxu0 %v97
    %216 = vmatpush.msra.mxu0 %v93
    %217 = vmatpush.msra.mxu0 %v89
    %218 = vmatpush.msra.mxu0 %v85
    %219 = vmatpush.msra.mxu0 %v81
    %220 = vmatpush.msra.mxu0 %v77
    %221 = vmatmul.f32.gmra.mxu0 %v60
    %v222 = vpop.f32.mrf.mxu0
    %v223 = vadd.f32 0.0, %v222
    %224 = vmatmul.f32.gmra.mxu0 %v61
    %v225 = vpop.f32.mrf.mxu0
    %v226 = vadd.f32 0.0, %v225
    %227 = vmatmul.f32.gmra.mxu0 %v62
    %v228 = vpop.f32.mrf.mxu0
    %v229 = vadd.f32 0.0, %v228
    %230 = vmatmul.f32.gmra.mxu0 %v63
    %v231 = vpop.f32.mrf.mxu0
    %v232 = vadd.f32 0.0, %v231
    %233 = vmatmul.f32.gmra.mxu0 %v64
    %v234 = vpop.f32.mrf.mxu0
    %v235 = vadd.f32 0.0, %v234
    %236 = vmatmul.f32.gmra.mxu0 %v65
    %v237 = vpop.f32.mrf.mxu0
    %v238 = vadd.f32 0.0, %v237
    %239 = vmatmul.f32.gmra.mxu0 %v66
    %v240 = vpop.f32.mrf.mxu0
    %v241 = vadd.f32 0.0, %v240
    %242 = vmatmul.f32.gmra.mxu0 %v67
    %v243 = vpop.f32.mrf.mxu0
    %v244 = vadd.f32 0.0, %v243
    %245 = vmatmul.f32.gmra.mxu0 %v68
    %v246 = vpop.f32.mrf.mxu0
    %v247 = vadd.f32 0.0, %v246
    %248 = vmatmul.f32.gmra.mxu0 %v69
    %v249 = vpop.f32.mrf.mxu0
    %v250 = vadd.f32 0.0, %v249
    %251 = vmatmul.f32.gmra.mxu0 %v70
    %v252 = vpop.f32.mrf.mxu0
    %v253 = vadd.f32 0.0, %v252
    %254 = vmatmul.f32.gmra.mxu0 %v71
    %v255 = vpop.f32.mrf.mxu0
    %v256 = vadd.f32 0.0, %v255
    %257 = vmatmul.f32.gmra.mxu0 %v72
    %v258 = vpop.f32.mrf.mxu0
    %v259 = vadd.f32 0.0, %v258
    %260 = vmatmul.f32.gmra.mxu0 %v73
    %v261 = vpop.f32.mrf.mxu0
    %v262 = vadd.f32 0.0, %v261
    %263 = vmatmul.f32.gmra.mxu0 %v74
    %v264 = vpop.f32.mrf.mxu0
    %v265 = vadd.f32 0.0, %v264
    %266 = vmatmul.f32.gmra.mxu0 %v75
    %v267 = vpop.f32.mrf.mxu0
    %v268 = vadd.f32 0.0, %v267
    %269 = vdwg.mxu0
    %270 = vmatpush.msra.mxu0 %v138
    %271 = vmatpush.msra.mxu0 %v134
    %272 = vmatpush.msra.mxu0 %v130
    %273 = vmatpush.msra.mxu0 %v126
    %274 = vmatpush.msra.mxu0 %v122
    %275 = vmatpush.msra.mxu0 %v118
    %276 = vmatpush.msra.mxu0 %v114
    %277 = vmatpush.msra.mxu0 %v110
    %278 = vmatpush.msra.mxu0 %v106
    %279 = vmatpush.msra.mxu0 %v102
    %280 = vmatpush.msra.mxu0 %v98
    %281 = vmatpush.msra.mxu0 %v94
    %282 = vmatpush.msra.mxu0 %v90
    %283 = vmatpush.msra.mxu0 %v86
    %284 = vmatpush.msra.mxu0 %v82
    %285 = vmatpush.msra.mxu0 %v78
    %286 = vmatmul.f32.gmra.mxu0 %v60
    %v287 = vpop.f32.mrf.mxu0
    %v288 = vadd.f32 0.0, %v287
    %289 = vmatmul.f32.gmra.mxu0 %v61
    %v290 = vpop.f32.mrf.mxu0
    %v291 = vadd.f32 0.0, %v290
    %292 = vmatmul.f32.gmra.mxu0 %v62
    %v293 = vpop.f32.mrf.mxu0
    %v294 = vadd.f32 0.0, %v293
    %295 = vmatmul.f32.gmra.mxu0 %v63
    %v296 = vpop.f32.mrf.mxu0
    %v297 = vadd.f32 0.0, %v296
    %298 = vmatmul.f32.gmra.mxu0 %v64
    %v299 = vpop.f32.mrf.mxu0
    %v300 = vadd.f32 0.0, %v299
    %301 = vmatmul.f32.gmra.mxu0 %v65
    %v302 = vpop.f32.mrf.mxu0
    %v303 = vadd.f32 0.0, %v302
    %304 = vmatmul.f32.gmra.mxu0 %v66
    %v305 = vpop.f32.mrf.mxu0
    %v306 = vadd.f32 0.0, %v305
    %307 = vmatmul.f32.gmra.mxu0 %v67
    %v308 = vpop.f32.mrf.mxu0
    %v309 = vadd.f32 0.0, %v308
    %310 = vmatmul.f32.gmra.mxu0 %v68
    %v311 = vpop.f32.mrf.mxu0
    %v312 = vadd.f32 0.0, %v311
    %313 = vmatmul.f32.gmra.mxu0 %v69
    %v314 = vpop.f32.mrf.mxu0
    %v315 = vadd.f32 0.0, %v314
    %316 = vmatmul.f32.gmra.mxu0 %v70
    %v317 = vpop.f32.mrf.mxu0
    %v318 = vadd.f32 0.0, %v317
    %319 = vmatmul.f32.gmra.mxu0 %v71
    %v320 = vpop.f32.mrf.mxu0
    %v321 = vadd.f32 0.0, %v320
    %322 = vmatmul.f32.gmra.mxu0 %v72
    %v323 = vpop.f32.mrf.mxu0
    %v324 = vadd.f32 0.0, %v323
    %325 = vmatmul.f32.gmra.mxu0 %v73
    %v326 = vpop.f32.mrf.mxu0
    %v327 = vadd.f32 0.0, %v326
    %328 = vmatmul.f32.gmra.mxu0 %v74
    %v329 = vpop.f32.mrf.mxu0
    %v330 = vadd.f32 0.0, %v329
    %331 = vmatmul.f32.gmra.mxu0 %v75
    %v332 = vpop.f32.mrf.mxu0
    %v333 = vadd.f32 0.0, %v332
    %334 = vdwg.mxu0
    %335 = vmatpush.msra.mxu0 %v139
    %336 = vmatpush.msra.mxu0 %v135
    %337 = vmatpush.msra.mxu0 %v131
    %338 = vmatpush.msra.mxu0 %v127
    %339 = vmatpush.msra.mxu0 %v123
    %340 = vmatpush.msra.mxu0 %v119
    %341 = vmatpush.msra.mxu0 %v115
    %342 = vmatpush.msra.mxu0 %v111
    %343 = vmatpush.msra.mxu0 %v107
    %344 = vmatpush.msra.mxu0 %v103
    %345 = vmatpush.msra.mxu0 %v99
    %346 = vmatpush.msra.mxu0 %v95
    %347 = vmatpush.msra.mxu0 %v91
    %348 = vmatpush.msra.mxu0 %v87
    %349 = vmatpush.msra.mxu0 %v83
    %350 = vmatpush.msra.mxu0 %v79
    %351 = vmatmul.f32.gmra.mxu0 %v60
    %v352 = vpop.f32.mrf.mxu0
    %v353 = vadd.f32 0.0, %v352
    %354 = vmatmul.f32.gmra.mxu0 %v61
    %v355 = vpop.f32.mrf.mxu0
    %v356 = vadd.f32 0.0, %v355
    %357 = vmatmul.f32.gmra.mxu0 %v62
    %v358 = vpop.f32.mrf.mxu0
    %v359 = vadd.f32 0.0, %v358
    %360 = vmatmul.f32.gmra.mxu0 %v63
    %v361 = vpop.f32.mrf.mxu0
    %v362 = vadd.f32 0.0, %v361
    %363 = vmatmul.f32.gmra.mxu0 %v64
    %v364 = vpop.f32.mrf.mxu0
    %v365 = vadd.f32 0.0, %v364
    %366 = vmatmul.f32.gmra.mxu0 %v65
    %v367 = vpop.f32.mrf.mxu0
    %v368 = vadd.f32 0.0, %v367
    %369 = vmatmul.f32.gmra.mxu0 %v66
    %v370 = vpop.f32.mrf.mxu0
    %v371 = vadd.f32 0.0, %v370
    %372 = vmatmul.f32.gmra.mxu0 %v67
    %v373 = vpop.f32.mrf.mxu0
    %v374 = vadd.f32 0.0, %v373
    %375 = vmatmul.f32.gmra.mxu0 %v68
    %v376 = vpop.f32.mrf.mxu0
    %v377 = vadd.f32 0.0, %v376
    %378 = vmatmul.f32.gmra.mxu0 %v69
    %v379 = vpop.f32.mrf.mxu0
    %v380 = vadd.f32 0.0, %v379
    %381 = vmatmul.f32.gmra.mxu0 %v70
    %v382 = vpop.f32.mrf.mxu0
    %v383 = vadd.f32 0.0, %v382
    %384 = vmatmul.f32.gmra.mxu0 %v71
    %v385 = vpop.f32.mrf.mxu0
    %v386 = vadd.f32 0.0, %v385
    %387 = vmatmul.f32.gmra.mxu0 %v72
    %v388 = vpop.f32.mrf.mxu0
    %v389 = vadd.f32 0.0, %v388
    %390 = vmatmul.f32.gmra.mxu0 %v73
    %v391 = vpop.f32.mrf.mxu0
    %v392 = vadd.f32 0.0, %v391
    %393 = vmatmul.f32.gmra.mxu0 %v74
    %v394 = vpop.f32.mrf.mxu0
    %v395 = vadd.f32 0.0, %v394
    %396 = vmatmul.f32.gmra.mxu0 %v75
    %v397 = vpop.f32.mrf.mxu0
    %v398 = vadd.f32 0.0, %v397
    %399 = vdwg.mxu0
    %p400 = scmp.eq.s32.totalorder 0, 0
    // Predicated region
    $region26: #{tpu_custom_call.1} parent=1 // pred_check
      %p401 = pneg %p400
    $region27: #{tpu_custom_call.1} parent=1 // pred_check_branch
      %403 = sbr.rel (%p401) target = $region29
    $region28: #{tpu_custom_call.1} parent=1 // pred_region
      %v404 = vld [vmem:[#allocation7] sm:$0xf]
      %v406 = vperm.slane %v404, 0
      %v407 = vperm.slane %v404, 1
      %v408 = vperm.slane %v404, 2
      %v409 = vperm.slane %v404, 3
      %v414 = vadd.f32 %v158, %v406
      %v415 = vadd.f32 %v223, %v407
      %v416 = vadd.f32 %v288, %v408
      %v417 = vadd.f32 %v353, %v409
      %v418 = vadd.f32 %v161, %v406
      %v419 = vadd.f32 %v226, %v407
      %v420 = vadd.f32 %v291, %v408
      %v421 = vadd.f32 %v356, %v409
      %v422 = vadd.f32 %v164, %v406
      %v423 = vadd.f32 %v229, %v407
      %v424 = vadd.f32 %v294, %v408
      %v425 = vadd.f32 %v359, %v409
      %v426 = vadd.f32 %v167, %v406
      %v427 = vadd.f32 %v232, %v407
      %v428 = vadd.f32 %v297, %v408
      %v429 = vadd.f32 %v362, %v409
      %v430 = vadd.f32 %v170, %v406
      %v431 = vadd.f32 %v235, %v407
      %v432 = vadd.f32 %v300, %v408
      %v433 = vadd.f32 %v365, %v409
      %v434 = vadd.f32 %v173, %v406
      %v435 = vadd.f32 %v238, %v407
      %v436 = vadd.f32 %v303, %v408
      %v437 = vadd.f32 %v368, %v409
      %v438 = vadd.f32 %v176, %v406
      %v439 = vadd.f32 %v241, %v407
      %v440 = vadd.f32 %v306, %v408
      %v441 = vadd.f32 %v371, %v409
      %v442 = vadd.f32 %v179, %v406
      %v443 = vadd.f32 %v244, %v407
      %v444 = vadd.f32 %v309, %v408
      %v445 = vadd.f32 %v374, %v409
      %v446 = vadd.f32 %v182, %v406
      %v447 = vadd.f32 %v247, %v407
      %v448 = vadd.f32 %v312, %v408
      %v449 = vadd.f32 %v377, %v409
      %v450 = vadd.f32 %v185, %v406
      %v451 = vadd.f32 %v250, %v407
      %v452 = vadd.f32 %v315, %v408
      %v453 = vadd.f32 %v380, %v409
      %v454 = vadd.f32 %v188, %v406
      %v455 = vadd.f32 %v253, %v407
      %v456 = vadd.f32 %v318, %v408
      %v457 = vadd.f32 %v383, %v409
      %v458 = vadd.f32 %v191, %v406
      %v459 = vadd.f32 %v256, %v407
      %v460 = vadd.f32 %v321, %v408
      %v461 = vadd.f32 %v386, %v409
      %v462 = vadd.f32 %v194, %v406
      %v463 = vadd.f32 %v259, %v407
      %v464 = vadd.f32 %v324, %v408
      %v465 = vadd.f32 %v389, %v409
      %v466 = vadd.f32 %v197, %v406
      %v467 = vadd.f32 %v262, %v407
      %v468 = vadd.f32 %v327, %v408
      %v469 = vadd.f32 %v392, %v409
      %v470 = vadd.f32 %v200, %v406
      %v471 = vadd.f32 %v265, %v407
      %v472 = vadd.f32 %v330, %v408
      %v473 = vadd.f32 %v395, %v409
      %v474 = vadd.f32 %v203, %v406
      %v475 = vadd.f32 %v268, %v407
      %v476 = vadd.f32 %v333, %v408
      %v477 = vadd.f32 %v398, %v409
      %478 = vst [vmem:[#allocation8] sm:$0xff] %v414
      %479 = vst [vmem:[#allocation8 + $0x8] sm:$0xff] %v415
      %480 = vst [vmem:[#allocation8 + $0x10] sm:$0xff] %v416
      %481 = vst [vmem:[#allocation8 + $0x18] sm:$0xff] %v417
      %482 = vst [vmem:[#allocation8 + $0x20] sm:$0xff] %v418
      %483 = vst [vmem:[#allocation8 + $0x28] sm:$0xff] %v419
      %484 = vst [vmem:[#allocation8 + $0x30] sm:$0xff] %v420
      %485 = vst [vmem:[#allocation8 + $0x38] sm:$0xff] %v421
      %486 = vst [vmem:[#allocation8 + $0x40] sm:$0xff] %v422
      %487 = vst [vmem:[#allocation8 + $0x48] sm:$0xff] %v423
      %488 = vst [vmem:[#allocation8 + $0x50] sm:$0xff] %v424
      %489 = vst [vmem:[#allocation8 + $0x58] sm:$0xff] %v425
      %490 = vst [vmem:[#allocation8 + $0x60] sm:$0xff] %v426
      %491 = vst [vmem:[#allocation8 + $0x68] sm:$0xff] %v427
      %492 = vst [vmem:[#allocation8 + $0x70] sm:$0xff] %v428
      %493 = vst [vmem:[#allocation8 + $0x78] sm:$0xff] %v429
      %494 = vst [vmem:[#allocation8 + $0x80] sm:$0xff] %v430
      %495 = vst [vmem:[#allocation8 + $0x88] sm:$0xff] %v431
      %496 = vst [vmem:[#allocation8 + $0x90] sm:$0xff] %v432
      %497 = vst [vmem:[#allocation8 + $0x98] sm:$0xff] %v433
      %498 = vst [vmem:[#allocation8 + $0xa0] sm:$0xff] %v434
      %499 = vst [vmem:[#allocation8 + $0xa8] sm:$0xff] %v435
      %500 = vst [vmem:[#allocation8 + $0xb0] sm:$0xff] %v436
      %501 = vst [vmem:[#allocation8 + $0xb8] sm:$0xff] %v437
      %502 = vst [vmem:[#allocation8 + $0xc0] sm:$0xff] %v438
      %503 = vst [vmem:[#allocation8 + $0xc8] sm:$0xff] %v439
      %504 = vst [vmem:[#allocation8 + $0xd0] sm:$0xff] %v440
      %505 = vst [vmem:[#allocation8 + $0xd8] sm:$0xff] %v441
      %506 = vst [vmem:[#allocation8 + $0xe0] sm:$0xff] %v442
      %507 = vst [vmem:[#allocation8 + $0xe8] sm:$0xff] %v443
      %508 = vst [vmem:[#allocation8 + $0xf0] sm:$0xff] %v444
      %509 = vst [vmem:[#allocation8 + $0xf8] sm:$0xff] %v445
      %510 = vst [vmem:[#allocation8 + $0x100] sm:$0xff] %v446
      %511 = vst [vmem:[#allocation8 + $0x108] sm:$0xff] %v447
      %512 = vst [vmem:[#allocation8 + $0x110] sm:$0xff] %v448
      %513 = vst [vmem:[#allocation8 + $0x118] sm:$0xff] %v449
      %514 = vst [vmem:[#allocation8 + $0x120] sm:$0xff] %v450
      %515 = vst [vmem:[#allocation8 + $0x128] sm:$0xff] %v451
      %516 = vst [vmem:[#allocation8 + $0x130] sm:$0xff] %v452
      %517 = vst [vmem:[#allocation8 + $0x138] sm:$0xff] %v453
      %518 = vst [vmem:[#allocation8 + $0x140] sm:$0xff] %v454
      %519 = vst [vmem:[#allocation8 + $0x148] sm:$0xff] %v455
      %520 = vst [vmem:[#allocation8 + $0x150] sm:$0xff] %v456
      %521 = vst [vmem:[#allocation8 + $0x158] sm:$0xff] %v457
      %522 = vst [vmem:[#allocation8 + $0x160] sm:$0xff] %v458
      %523 = vst [vmem:[#allocation8 + $0x168] sm:$0xff] %v459
      %524 = vst [vmem:[#allocation8 + $0x170] sm:$0xff] %v460
      %525 = vst [vmem:[#allocation8 + $0x178] sm:$0xff] %v461
      %526 = vst [vmem:[#allocation8 + $0x180] sm:$0xff] %v462
      %527 = vst [vmem:[#allocation8 + $0x188] sm:$0xff] %v463
      %528 = vst [vmem:[#allocation8 + $0x190] sm:$0xff] %v464
      %529 = vst [vmem:[#allocation8 + $0x198] sm:$0xff] %v465
      %530 = vst [vmem:[#allocation8 + $0x1a0] sm:$0xff] %v466
      %531 = vst [vmem:[#allocation8 + $0x1a8] sm:$0xff] %v467
      %532 = vst [vmem:[#allocation8 + $0x1b0] sm:$0xff] %v468
      %533 = vst [vmem:[#allocation8 + $0x1b8] sm:$0xff] %v469
      %534 = vst [vmem:[#allocation8 + $0x1c0] sm:$0xff] %v470
      %535 = vst [vmem:[#allocation8 + $0x1c8] sm:$0xff] %v471
      %536 = vst [vmem:[#allocation8 + $0x1d0] sm:$0xff] %v472
      %537 = vst [vmem:[#allocation8 + $0x1d8] sm:$0xff] %v473
      %538 = vst [vmem:[#allocation8 + $0x1e0] sm:$0xff] %v474
      %539 = vst [vmem:[#allocation8 + $0x1e8] sm:$0xff] %v475
      %540 = vst [vmem:[#allocation8 + $0x1f0] sm:$0xff] %v476
      %541 = vst [vmem:[#allocation8 + $0x1f8] sm:$0xff] %v477
    $region29: #{tpu_custom_call.1} parent=1 // pred_fallthru
      _
    %p542 = scmp.gt.s32.totalorder 0, 0
    // Predicated region
    $region30: #{tpu_custom_call.1} parent=1 // pred_check
      %p543 = pneg %p542
    $region31: #{tpu_custom_call.1} parent=1 // pred_check_branch
      %545 = sbr.rel (%p543) target = $region33
    $region32: #{tpu_custom_call.1} parent=1 // pred_region
      %v546 = vld [vmem:[#allocation8] sm:$0xff]
      %v547 = vld [vmem:[#allocation8 + $0x8] sm:$0xff]
      %v548 = vld [vmem:[#allocation8 + $0x10] sm:$0xff]
      %v549 = vld [vmem:[#allocation8 + $0x18] sm:$0xff]
      %v550 = vld [vmem:[#allocation8 + $0x20] sm:$0xff]
      %v551 = vld [vmem:[#allocation8 + $0x28] sm:$0xff]
      %v552 = vld [vmem:[#allocation8 + $0x30] sm:$0xff]
      %v553 = vld [vmem:[#allocation8 + $0x38] sm:$0xff]
      %v554 = vld [vmem:[#allocation8 + $0x40] sm:$0xff]
      %v555 = vld [vmem:[#allocation8 + $0x48] sm:$0xff]
      %v556 = vld [vmem:[#allocation8 + $0x50] sm:$0xff]
      %v557 = vld [vmem:[#allocation8 + $0x58] sm:$0xff]
      %v558 = vld [vmem:[#allocation8 + $0x60] sm:$0xff]
      %v559 = vld [vmem:[#allocation8 + $0x68] sm:$0xff]
      %v560 = vld [vmem:[#allocation8 + $0x70] sm:$0xff]
      %v561 = vld [vmem:[#allocation8 + $0x78] sm:$0xff]
      %v562 = vld [vmem:[#allocation8 + $0x80] sm:$0xff]
      %v563 = vld [vmem:[#allocation8 + $0x88] sm:$0xff]
      %v564 = vld [vmem:[#allocation8 + $0x90] sm:$0xff]
      %v565 = vld [vmem:[#allocation8 + $0x98] sm:$0xff]
      %v566 = vld [vmem:[#allocation8 + $0xa0] sm:$0xff]
      %v567 = vld [vmem:[#allocation8 + $0xa8] sm:$0xff]
      %v568 = vld [vmem:[#allocation8 + $0xb0] sm:$0xff]
      %v569 = vld [vmem:[#allocation8 + $0xb8] sm:$0xff]
      %v570 = vld [vmem:[#allocation8 + $0xc0] sm:$0xff]
      %v571 = vld [vmem:[#allocation8 + $0xc8] sm:$0xff]
      %v572 = vld [vmem:[#allocation8 + $0xd0] sm:$0xff]
      %v573 = vld [vmem:[#allocation8 + $0xd8] sm:$0xff]
      %v574 = vld [vmem:[#allocation8 + $0xe0] sm:$0xff]
      %v575 = vld [vmem:[#allocation8 + $0xe8] sm:$0xff]
      %v576 = vld [vmem:[#allocation8 + $0xf0] sm:$0xff]
      %v577 = vld [vmem:[#allocation8 + $0xf8] sm:$0xff]
      %v578 = vld [vmem:[#allocation8 + $0x100] sm:$0xff]
      %v579 = vld [vmem:[#allocation8 + $0x108] sm:$0xff]
      %v580 = vld [vmem:[#allocation8 + $0x110] sm:$0xff]
      %v581 = vld [vmem:[#allocation8 + $0x118] sm:$0xff]
      %v582 = vld [vmem:[#allocation8 + $0x120] sm:$0xff]
      %v583 = vld [vmem:[#allocation8 + $0x128] sm:$0xff]
      %v584 = vld [vmem:[#allocation8 + $0x130] sm:$0xff]
      %v585 = vld [vmem:[#allocation8 + $0x138] sm:$0xff]
      %v586 = vld [vmem:[#allocation8 + $0x140] sm:$0xff]
      %v587 = vld [vmem:[#allocation8 + $0x148] sm:$0xff]
      %v588 = vld [vmem:[#allocation8 + $0x150] sm:$0xff]
      %v589 = vld [vmem:[#allocation8 + $0x158] sm:$0xff]
      %v590 = vld [vmem:[#allocation8 + $0x160] sm:$0xff]
      %v591 = vld [vmem:[#allocation8 + $0x168] sm:$0xff]
      %v592 = vld [vmem:[#allocation8 + $0x170] sm:$0xff]
      %v593 = vld [vmem:[#allocation8 + $0x178] sm:$0xff]
      %v594 = vld [vmem:[#allocation8 + $0x180] sm:$0xff]
      %v595 = vld [vmem:[#allocation8 + $0x188] sm:$0xff]
      %v596 = vld [vmem:[#allocation8 + $0x190] sm:$0xff]
      %v597 = vld [vmem:[#allocation8 + $0x198] sm:$0xff]
      %v598 = vld [vmem:[#allocation8 + $0x1a0] sm:$0xff]
      %v599 = vld [vmem:[#allocation8 + $0x1a8] sm:$0xff]
      %v600 = vld [vmem:[#allocation8 + $0x1b0] sm:$0xff]
      %v601 = vld [vmem:[#allocation8 + $0x1b8] sm:$0xff]
      %v602 = vld [vmem:[#allocation8 + $0x1c0] sm:$0xff]
      %v603 = vld [vmem:[#allocation8 + $0x1c8] sm:$0xff]
      %v604 = vld [vmem:[#allocation8 + $0x1d0] sm:$0xff]
      %v605 = vld [vmem:[#allocation8 + $0x1d8] sm:$0xff]
      %v606 = vld [vmem:[#allocation8 + $0x1e0] sm:$0xff]
      %v607 = vld [vmem:[#allocation8 + $0x1e8] sm:$0xff]
      %v608 = vld [vmem:[#allocation8 + $0x1f0] sm:$0xff]
      %v609 = vld [vmem:[#allocation8 + $0x1f8] sm:$0xff]
      %v610 = vadd.f32 %v546, %v158
      %v611 = vadd.f32 %v547, %v223
      %v612 = vadd.f32 %v548, %v288
      %v613 = vadd.f32 %v549, %v353
      %v614 = vadd.f32 %v550, %v161
      %v615 = vadd.f32 %v551, %v226
      %v616 = vadd.f32 %v552, %v291
      %v617 = vadd.f32 %v553, %v356
      %v618 = vadd.f32 %v554, %v164
      %v619 = vadd.f32 %v555, %v229
      %v620 = vadd.f32 %v556, %v294
      %v621 = vadd.f32 %v557, %v359
      %v622 = vadd.f32 %v558, %v167
      %v623 = vadd.f32 %v559, %v232
      %v624 = vadd.f32 %v560, %v297
      %v625 = vadd.f32 %v561, %v362
      %v626 = vadd.f32 %v562, %v170
      %v627 = vadd.f32 %v563, %v235
      %v628 = vadd.f32 %v564, %v300
      %v629 = vadd.f32 %v565, %v365
      %v630 = vadd.f32 %v566, %v173
      %v631 = vadd.f32 %v567, %v238
      %v632 = vadd.f32 %v568, %v303
      %v633 = vadd.f32 %v569, %v368
      %v634 = vadd.f32 %v570, %v176
      %v635 = vadd.f32 %v571, %v241
      %v636 = vadd.f32 %v572, %v306
      %v637 = vadd.f32 %v573, %v371
      %v638 = vadd.f32 %v574, %v179
      %v639 = vadd.f32 %v575, %v244
      %v640 = vadd.f32 %v576, %v309
      %v641 = vadd.f32 %v577, %v374
      %v642 = vadd.f32 %v578, %v182
      %v643 = vadd.f32 %v579, %v247
      %v644 = vadd.f32 %v580, %v312
      %v645 = vadd.f32 %v581, %v377
      %v646 = vadd.f32 %v582, %v185
      %v647 = vadd.f32 %v583, %v250
      %v648 = vadd.f32 %v584, %v315
      %v649 = vadd.f32 %v585, %v380
      %v650 = vadd.f32 %v586, %v188
      %v651 = vadd.f32 %v587, %v253
      %v652 = vadd.f32 %v588, %v318
      %v653 = vadd.f32 %v589, %v383
      %v654 = vadd.f32 %v590, %v191
      %v655 = vadd.f32 %v591, %v256
      %v656 = vadd.f32 %v592, %v321
      %v657 = vadd.f32 %v593, %v386
      %v658 = vadd.f32 %v594, %v194
      %v659 = vadd.f32 %v595, %v259
      %v660 = vadd.f32 %v596, %v324
      %v661 = vadd.f32 %v597, %v389
      %v662 = vadd.f32 %v598, %v197
      %v663 = vadd.f32 %v599, %v262
      %v664 = vadd.f32 %v600, %v327
      %v665 = vadd.f32 %v601, %v392
      %v666 = vadd.f32 %v602, %v200
      %v667 = vadd.f32 %v603, %v265
      %v668 = vadd.f32 %v604, %v330
      %v669 = vadd.f32 %v605, %v395
      %v670 = vadd.f32 %v606, %v203
      %v671 = vadd.f32 %v607, %v268
      %v672 = vadd.f32 %v608, %v333
      %v673 = vadd.f32 %v609, %v398
      %674 = vst [vmem:[#allocation8] sm:$0xff] %v610
      %675 = vst [vmem:[#allocation8 + $0x8] sm:$0xff] %v611
      %676 = vst [vmem:[#allocation8 + $0x10] sm:$0xff] %v612
      %677 = vst [vmem:[#allocation8 + $0x18] sm:$0xff] %v613
      %678 = vst [vmem:[#allocation8 + $0x20] sm:$0xff] %v614
      %679 = vst [vmem:[#allocation8 + $0x28] sm:$0xff] %v615
      %680 = vst [vmem:[#allocation8 + $0x30] sm:$0xff] %v616
      %681 = vst [vmem:[#allocation8 + $0x38] sm:$0xff] %v617
      %682 = vst [vmem:[#allocation8 + $0x40] sm:$0xff] %v618
      %683 = vst [vmem:[#allocation8 + $0x48] sm:$0xff] %v619
      %684 = vst [vmem:[#allocation8 + $0x50] sm:$0xff] %v620
      %685 = vst [vmem:[#allocation8 + $0x58] sm:$0xff] %v621
      %686 = vst [vmem:[#allocation8 + $0x60] sm:$0xff] %v622
      %687 = vst [vmem:[#allocation8 + $0x68] sm:$0xff] %v623
      %688 = vst [vmem:[#allocation8 + $0x70] sm:$0xff] %v624
      %689 = vst [vmem:[#allocation8 + $0x78] sm:$0xff] %v625
      %690 = vst [vmem:[#allocation8 + $0x80] sm:$0xff] %v626
      %691 = vst [vmem:[#allocation8 + $0x88] sm:$0xff] %v627
      %692 = vst [vmem:[#allocation8 + $0x90] sm:$0xff] %v628
      %693 = vst [vmem:[#allocation8 + $0x98] sm:$0xff] %v629
      %694 = vst [vmem:[#allocation8 + $0xa0] sm:$0xff] %v630
      %695 = vst [vmem:[#allocation8 + $0xa8] sm:$0xff] %v631
      %696 = vst [vmem:[#allocation8 + $0xb0] sm:$0xff] %v632
      %697 = vst [vmem:[#allocation8 + $0xb8] sm:$0xff] %v633
      %698 = vst [vmem:[#allocation8 + $0xc0] sm:$0xff] %v634
      %699 = vst [vmem:[#allocation8 + $0xc8] sm:$0xff] %v635
      %700 = vst [vmem:[#allocation8 + $0xd0] sm:$0xff] %v636
      %701 = vst [vmem:[#allocation8 + $0xd8] sm:$0xff] %v637
      %702 = vst [vmem:[#allocation8 + $0xe0] sm:$0xff] %v638
      %703 = vst [vmem:[#allocation8 + $0xe8] sm:$0xff] %v639
      %704 = vst [vmem:[#allocation8 + $0xf0] sm:$0xff] %v640
      %705 = vst [vmem:[#allocation8 + $0xf8] sm:$0xff] %v641
      %706 = vst [vmem:[#allocation8 + $0x100] sm:$0xff] %v642
      %707 = vst [vmem:[#allocation8 + $0x108] sm:$0xff] %v643
      %708 = vst [vmem:[#allocation8 + $0x110] sm:$0xff] %v644
      %709 = vst [vmem:[#allocation8 + $0x118] sm:$0xff] %v645
      %710 = vst [vmem:[#allocation8 + $0x120] sm:$0xff] %v646
      %711 = vst [vmem:[#allocation8 + $0x128] sm:$0xff] %v647
      %712 = vst [vmem:[#allocation8 + $0x130] sm:$0xff] %v648
      %713 = vst [vmem:[#allocation8 + $0x138] sm:$0xff] %v649
      %714 = vst [vmem:[#allocation8 + $0x140] sm:$0xff] %v650
      %715 = vst [vmem:[#allocation8 + $0x148] sm:$0xff] %v651
      %716 = vst [vmem:[#allocation8 + $0x150] sm:$0xff] %v652
      %717 = vst [vmem:[#allocation8 + $0x158] sm:$0xff] %v653
      %718 = vst [vmem:[#allocation8 + $0x160] sm:$0xff] %v654
      %719 = vst [vmem:[#allocation8 + $0x168] sm:$0xff] %v655
      %720 = vst [vmem:[#allocation8 + $0x170] sm:$0xff] %v656
      %721 = vst [vmem:[#allocation8 + $0x178] sm:$0xff] %v657
      %722 = vst [vmem:[#allocation8 + $0x180] sm:$0xff] %v658
      %723 = vst [vmem:[#allocation8 + $0x188] sm:$0xff] %v659
      %724 = vst [vmem:[#allocation8 + $0x190] sm:$0xff] %v660
      %725 = vst [vmem:[#allocation8 + $0x198] sm:$0xff] %v661
      %726 = vst [vmem:[#allocation8 + $0x1a0] sm:$0xff] %v662
      %727 = vst [vmem:[#allocation8 + $0x1a8] sm:$0xff] %v663
      %728 = vst [vmem:[#allocation8 + $0x1b0] sm:$0xff] %v664
      %729 = vst [vmem:[#allocation8 + $0x1b8] sm:$0xff] %v665
      %730 = vst [vmem:[#allocation8 + $0x1c0] sm:$0xff] %v666
      %731 = vst [vmem:[#allocation8 + $0x1c8] sm:$0xff] %v667
      %732 = vst [vmem:[#allocation8 + $0x1d0] sm:$0xff] %v668
      %733 = vst [vmem:[#allocation8 + $0x1d8] sm:$0xff] %v669
      %734 = vst [vmem:[#allocation8 + $0x1e0] sm:$0xff] %v670
      %735 = vst [vmem:[#allocation8 + $0x1e8] sm:$0xff] %v671
      %736 = vst [vmem:[#allocation8 + $0x1f0] sm:$0xff] %v672
      %737 = vst [vmem:[#allocation8 + $0x1f8] sm:$0xff] %v673
    $region33: #{tpu_custom_call.1} parent=1 // pred_fallthru
      _
    // Predicated region
    $region34: #{tpu_custom_call.1} parent=1 // pred_check
      _
    $region35: #{tpu_custom_call.1} parent=1 // pred_check_branch
      %739 = sbr.rel (0) target = $region37
    $region36: #{tpu_custom_call.1} parent=1 // pred_region
      %741 = vsyncadd [#allocation4], 0
      %s742 = sshll.u32 [#allocation8], 4
      %s743 = int_to_ptr.vmem [resolvable:$true] %s742
      %s744 = sshll.u32 %s3, 4
      %s745 = int_to_ptr.hbm [resolvable:$true] %s744
      %750 = dma.vmem_to_hbm [thread:$0]  %s743, 8192, %s745, [#allocation4], 512, 512, 32
    $region37: #{tpu_custom_call.1} parent=1 // pred_fallthru
      _
    // Predicated region
    $region38: #{tpu_custom_call.1} parent=1 // pred_check
      _
    $region39: #{tpu_custom_call.1} parent=1 // pred_check_branch
      %752 = sbr.rel (0) target = $region41
    $region40: #{tpu_custom_call.1} parent=1 // pred_region
      %754 = dma.done [#allocation4], 8192
    $region41: #{tpu_custom_call.1} parent=1 // pred_fallthru
      _
    %755 = vsyncpa [#allocation3], 1
    %756 = vsyncpa [#allocation6], 1
    %757 = vsyncpa [#allocation4], 1

</llo_original>
